<compile_context>
chip_gen: v7x
topology: tpu7x:2x2x1
jax: 0.10.0
libtpu: 0.0.40
codegen_flags: <defaults>
</compile_context>

<pallas_src>
import functools
import math

import jax
import jax.numpy as jnp
from jax.experimental import pallas as pl
from jax.experimental.pallas import tpu as pltpu

_LANES = 128
_MAX_BLOCK_ROWS = 2048            # 2048 x 128 f32 = 1 MiB per block
# Plain Python ints (NOT jnp arrays) so they become jaxpr literals, not consts.
_GOLDEN = -1640531527             # 0x9E3779B9 as int32
_MIX_C1 = 0x7FEB352D              # lowbias32 constants
_MIX_C2 = -2073254261             # 0x846CA68B as int32
_TWO_PI = 2.0 * math.pi


def _round_up(n, m):
    return ((n + m - 1) // m) * m


def _mix32(x):
    """lowbias32 integer mixer on int32 (logical shifts emulated with mask)."""
    x = x ^ ((x >> 16) & 0x0000FFFF)
    x = x * _MIX_C1
    x = x ^ ((x >> 15) & 0x0001FFFF)
    x = x * _MIX_C2
    x = x ^ ((x >> 16) & 0x0000FFFF)
    return x


def _gaussian_noise_kernel(seed_ref, x_ref, o_ref, *, sigma):
    block_rows, lanes = x_ref.shape
    half = block_rows // 2  # both Box-Muller branches: one pair -> two outputs

    seed = seed_ref[0]

    # Globally-unique counter per normal *pair* (tile index mixed in so every
    # grid step draws independent noise).
    row = jax.lax.broadcasted_iota(jnp.int32, (half, lanes), 0)
    col = jax.lax.broadcasted_iota(jnp.int32, (half, lanes), 1)
    pair = pl.program_id(0) * (half * lanes) + row * lanes + col
    base = pair * 2 + seed * _GOLDEN

    h1 = _mix32(base)
    h2 = _mix32(base + 1)

    # 24-bit uniforms in (0, 1): exact in f32, never exactly 0 -> log is finite.
    inv24 = 1.0 / 16777216.0
    u1 = ((h1 & 0x00FFFFFF).astype(jnp.float32) + 0.5) * inv24
    u2 = ((h2 & 0x00FFFFFF).astype(jnp.float32) + 0.5) * inv24

    # Box-Muller, using BOTH outputs: top half of the tile gets r*cos, bottom
    # half r*sin (halves the hash + log/sqrt work per output element).
    r = jnp.sqrt(-2.0 * jnp.log(u1))
    theta = _TWO_PI * u2
    z = jnp.concatenate([r * jnp.cos(theta), r * jnp.sin(theta)], axis=0)

    x = x_ref[...].astype(jnp.float32)
    # out = x + noise * (sigma * x)   (relative Gaussian noise)
    o_ref[...] = (x + z * (sigma * x)).astype(o_ref.dtype)


def gaussian_noise(x, seed, *, sigma=0.1, training=True, is_relative_detach=True):
    """Pallas implementation of GaussianNoise.forward (any shape, any float dtype)."""
    # TODO(synk): is_relative_detach only changes autodiff (detach of the scale);
    # the forward value is identical, so it is ignored here.
    del is_relative_detach
    if (not training) or sigma == 0:
        return x

    orig_shape = x.shape
    orig_dtype = x.dtype
    total = x.size

    # Flatten to a lane-dense (rows, 128) slab; keep rows a multiple of 16 so
    # both Box-Muller halves stay 8-sublane aligned.
    rows = _round_up(-(-total // _LANES), 16)
    padded = rows * _LANES

    xf = jnp.ravel(x)
    if padded != total:
        xf = jnp.pad(xf, (0, padded - total))
    x2d = xf.reshape(rows, _LANES)

    block_rows = min(_MAX_BLOCK_ROWS, rows)
    grid = (pl.cdiv(rows, block_rows),)

    seed_arr = jnp.asarray([seed], dtype=jnp.int32)
    kernel = functools.partial(_gaussian_noise_kernel, sigma=float(sigma))

    out2d = pl.pallas_call(
        kernel,
        out_shape=jax.ShapeDtypeStruct((rows, _LANES), orig_dtype),
        grid=grid,
        in_specs=[
            pl.BlockSpec(memory_space=pltpu.MemorySpace.SMEM),       # seed scalar
            pl.BlockSpec((block_rows, _LANES), lambda i: (i, 0)),    # x tile
        ],
        out_specs=pl.BlockSpec((block_rows, _LANES), lambda i: (i, 0)),
        input_output_aliases={1: 0},  # x slab (arg 1 after seed) -> output buffer
        compiler_params=pltpu.CompilerParams(
            dimension_semantics=("parallel",),
            vmem_limit_bytes=32 * 1024 * 1024,
        ),
    )(seed_arr, x2d)

    return out2d.reshape(-1)[:total].reshape(orig_shape)


if __name__ == "__main__":
    key = jax.random.PRNGKey(0)
    # NCHW input, small shapes: batch=2, channels=4, spatial=16x16
    x = jax.random.normal(key, (2, 4, 16, 16), dtype=jnp.float32)

    sigma = 0.1
    out = gaussian_noise(x, seed=42, sigma=sigma, training=True)
    out = jax.block_until_ready(out)

    # Basic sanity checks on the forward semantics.
    assert out.shape == x.shape and out.dtype == x.dtype
    assert bool(jnp.isfinite(out).all())

    # out = x * (1 + sigma * z)  =>  implied z should look roughly standard normal.
    mask = jnp.abs(x) > 1e-3
    safe_x = jnp.where(mask, x, 1.0)
    z_implied = jnp.where(mask, (out / safe_x - 1.0) / sigma, 0.0)
    n = jnp.sum(mask)
    z_mean = jnp.sum(z_implied) / n
    z_var = jnp.sum(jnp.where(mask, (z_implied - z_mean) ** 2, 0.0)) / n
    z_std = jnp.sqrt(z_var)
    assert abs(float(z_mean)) < 0.2, float(z_mean)
    assert 0.7 < float(z_std) < 1.3, float(z_std)

    # Eval mode must be identity.
    out_eval = jax.block_until_ready(gaussian_noise(x, seed=42, sigma=sigma, training=False))
    assert bool(jnp.array_equal(out_eval, x))

    print("KERNEL_OK")
</pallas_src>

<mosaic_0001>
module attributes {stable_mosaic.version = 11 : i64} {
  func.func @_gaussian_noise_kernel(%arg0: i32, %arg1: memref<1xi32, #tpu.memory_space<smem>>, %arg2: memref<16x128xf32, #tpu.memory_space<vmem>>, %arg3: memref<16x128xf32, #tpu.memory_space<vmem>>) attributes {dimension_semantics = [#tpu.dimension_semantics<parallel>], iteration_bounds = array<i64: 1>, scalar_prefetch = 0 : i64, scratch_operands = 0 : i64, tpu.core_type = #tpu.core_type<tc>, window_params = [{transform_indices = @transform_0, window_bounds = array<i64: 1>}, {transform_indices = @transform_1, window_bounds = array<i64: 16, 128>}, {transform_indices = @transform_2, window_bounds = array<i64: 16, 128>}]} {
    %c0 = arith.constant 0 : index
    %0 = memref.load %arg1[%c0] : memref<1xi32, #tpu.memory_space<smem>>
    %1 = tpu.iota {dimensions = array<i32: 0>} : vector<8x128xi32>
    %2 = tpu.iota {dimensions = array<i32: 1>} : vector<8x128xi32>
    %c1024_i32 = arith.constant 1024 : i32
    %3 = arith.muli %arg0, %c1024_i32 : i32
    %c128_i32 = arith.constant 128 : i32
    %4 = vector.broadcast %c128_i32 : i32 to vector<8x128xi32>
    %5 = arith.muli %1, %4 : vector<8x128xi32>
    %6 = vector.broadcast %3 : i32 to vector<8x128xi32>
    %7 = arith.addi %6, %5 : vector<8x128xi32>
    %8 = arith.addi %7, %2 : vector<8x128xi32>
    %c2_i32 = arith.constant 2 : i32
    %9 = vector.broadcast %c2_i32 : i32 to vector<8x128xi32>
    %10 = arith.muli %8, %9 : vector<8x128xi32>
    %c-1640531527_i32 = arith.constant -1640531527 : i32
    %11 = arith.muli %0, %c-1640531527_i32 : i32
    %12 = vector.broadcast %11 : i32 to vector<8x128xi32>
    %13 = arith.addi %10, %12 : vector<8x128xi32>
    %c16_i32 = arith.constant 16 : i32
    %14 = vector.broadcast %c16_i32 : i32 to vector<8x128xi32>
    %15 = arith.shrsi %13, %14 : vector<8x128xi32>
    %c65535_i32 = arith.constant 65535 : i32
    %16 = vector.broadcast %c65535_i32 : i32 to vector<8x128xi32>
    %17 = arith.andi %15, %16 : vector<8x128xi32>
    %18 = arith.xori %13, %17 : vector<8x128xi32>
    %c2146121005_i32 = arith.constant 2146121005 : i32
    %19 = vector.broadcast %c2146121005_i32 : i32 to vector<8x128xi32>
    %20 = arith.muli %18, %19 : vector<8x128xi32>
    %c15_i32 = arith.constant 15 : i32
    %21 = vector.broadcast %c15_i32 : i32 to vector<8x128xi32>
    %22 = arith.shrsi %20, %21 : vector<8x128xi32>
    %c131071_i32 = arith.constant 131071 : i32
    %23 = vector.broadcast %c131071_i32 : i32 to vector<8x128xi32>
    %24 = arith.andi %22, %23 : vector<8x128xi32>
    %25 = arith.xori %20, %24 : vector<8x128xi32>
    %c-2073254261_i32 = arith.constant -2073254261 : i32
    %26 = vector.broadcast %c-2073254261_i32 : i32 to vector<8x128xi32>
    %27 = arith.muli %25, %26 : vector<8x128xi32>
    %c16_i32_0 = arith.constant 16 : i32
    %28 = vector.broadcast %c16_i32_0 : i32 to vector<8x128xi32>
    %29 = arith.shrsi %27, %28 : vector<8x128xi32>
    %c65535_i32_1 = arith.constant 65535 : i32
    %30 = vector.broadcast %c65535_i32_1 : i32 to vector<8x128xi32>
    %31 = arith.andi %29, %30 : vector<8x128xi32>
    %32 = arith.xori %27, %31 : vector<8x128xi32>
    %c1_i32 = arith.constant 1 : i32
    %33 = vector.broadcast %c1_i32 : i32 to vector<8x128xi32>
    %34 = arith.addi %13, %33 : vector<8x128xi32>
    %c16_i32_2 = arith.constant 16 : i32
    %35 = vector.broadcast %c16_i32_2 : i32 to vector<8x128xi32>
    %36 = arith.shrsi %34, %35 : vector<8x128xi32>
    %c65535_i32_3 = arith.constant 65535 : i32
    %37 = vector.broadcast %c65535_i32_3 : i32 to vector<8x128xi32>
    %38 = arith.andi %36, %37 : vector<8x128xi32>
    %39 = arith.xori %34, %38 : vector<8x128xi32>
    %c2146121005_i32_4 = arith.constant 2146121005 : i32
    %40 = vector.broadcast %c2146121005_i32_4 : i32 to vector<8x128xi32>
    %41 = arith.muli %39, %40 : vector<8x128xi32>
    %c15_i32_5 = arith.constant 15 : i32
    %42 = vector.broadcast %c15_i32_5 : i32 to vector<8x128xi32>
    %43 = arith.shrsi %41, %42 : vector<8x128xi32>
    %c131071_i32_6 = arith.constant 131071 : i32
    %44 = vector.broadcast %c131071_i32_6 : i32 to vector<8x128xi32>
    %45 = arith.andi %43, %44 : vector<8x128xi32>
    %46 = arith.xori %41, %45 : vector<8x128xi32>
    %c-2073254261_i32_7 = arith.constant -2073254261 : i32
    %47 = vector.broadcast %c-2073254261_i32_7 : i32 to vector<8x128xi32>
    %48 = arith.muli %46, %47 : vector<8x128xi32>
    %c16_i32_8 = arith.constant 16 : i32
    %49 = vector.broadcast %c16_i32_8 : i32 to vector<8x128xi32>
    %50 = arith.shrsi %48, %49 : vector<8x128xi32>
    %c65535_i32_9 = arith.constant 65535 : i32
    %51 = vector.broadcast %c65535_i32_9 : i32 to vector<8x128xi32>
    %52 = arith.andi %50, %51 : vector<8x128xi32>
    %53 = arith.xori %48, %52 : vector<8x128xi32>
    %c16777215_i32 = arith.constant 16777215 : i32
    %54 = vector.broadcast %c16777215_i32 : i32 to vector<8x128xi32>
    %55 = arith.andi %32, %54 : vector<8x128xi32>
    %56 = arith.sitofp %55 : vector<8x128xi32> to vector<8x128xf32>
    %cst = arith.constant 5.000000e-01 : f32
    %57 = vector.broadcast %cst : f32 to vector<8x128xf32>
    %58 = arith.addf %56, %57 : vector<8x128xf32>
    %cst_10 = arith.constant 5.96046448E-8 : f32
    %59 = vector.broadcast %cst_10 : f32 to vector<8x128xf32>
    %60 = arith.mulf %58, %59 : vector<8x128xf32>
    %c16777215_i32_11 = arith.constant 16777215 : i32
    %61 = vector.broadcast %c16777215_i32_11 : i32 to vector<8x128xi32>
    %62 = arith.andi %53, %61 : vector<8x128xi32>
    %63 = arith.sitofp %62 : vector<8x128xi32> to vector<8x128xf32>
    %cst_12 = arith.constant 5.000000e-01 : f32
    %64 = vector.broadcast %cst_12 : f32 to vector<8x128xf32>
    %65 = arith.addf %63, %64 : vector<8x128xf32>
    %cst_13 = arith.constant 5.96046448E-8 : f32
    %66 = vector.broadcast %cst_13 : f32 to vector<8x128xf32>
    %67 = arith.mulf %65, %66 : vector<8x128xf32>
    %68 = math.log %60 : vector<8x128xf32>
    %cst_14 = arith.constant -2.000000e+00 : f32
    %69 = vector.broadcast %cst_14 : f32 to vector<8x128xf32>
    %70 = arith.mulf %69, %68 : vector<8x128xf32>
    %71 = math.sqrt %70 : vector<8x128xf32>
    %cst_15 = arith.constant 6.28318548 : f32
    %72 = vector.broadcast %cst_15 : f32 to vector<8x128xf32>
    %73 = arith.mulf %72, %67 : vector<8x128xf32>
    %74 = math.cos %73 : vector<8x128xf32>
    %75 = arith.mulf %71, %74 : vector<8x128xf32>
    %76 = math.sin %73 : vector<8x128xf32>
    %77 = arith.mulf %71, %76 : vector<8x128xf32>
    %78 = tpu.concatenate %75, %77 in 0 : vector<8x128xf32>, vector<8x128xf32> -> vector<16x128xf32>
    %c0_16 = arith.constant 0 : index
    %c0_17 = arith.constant 0 : index
    %79 = vector.load %arg2[%c0_16, %c0_17] : memref<16x128xf32, #tpu.memory_space<vmem>>, vector<16x128xf32>
    %cst_18 = arith.constant 1.000000e-01 : f32
    %80 = vector.broadcast %cst_18 : f32 to vector<16x128xf32>
    %81 = arith.mulf %80, %79 : vector<16x128xf32>
    %82 = arith.mulf %78, %81 : vector<16x128xf32>
    %83 = arith.addf %79, %82 : vector<16x128xf32>
    %c0_19 = arith.constant 0 : index
    %c0_20 = arith.constant 0 : index
    %84 = vector.load %arg3[%c0_19, %c0_20] : memref<16x128xf32, #tpu.memory_space<vmem>>, vector<16x128xf32>
    tpu.vector_store %arg3[%c0_19, %c0_20], %83 {strides = array<i32>} : memref<16x128xf32, #tpu.memory_space<vmem>>, vector<16x128xf32>,
    return
  }
  func.func @transform_0(%arg0: i32) -> i32 {
    %c0_i32 = arith.constant 0 : i32
    %c0_i32_0 = arith.constant 0 : i32
    return %c0_i32 : i32
  }
  func.func @transform_1(%arg0: i32) -> (i32, i32) {
    %c0_i32 = arith.constant 0 : i32
    %c0_i32_0 = arith.constant 0 : i32
    return %arg0, %c0_i32 : i32, i32
  }
  func.func @transform_2(%arg0: i32) -> (i32, i32) {
    %c0_i32 = arith.constant 0 : i32
    %c0_i32_0 = arith.constant 0 : i32
    return %arg0, %c0_i32 : i32, i32
  }
}

</mosaic_0001>

<llo_original>
// kernel: tpu_custom_call.1
$region0: #{tpu_custom_call.1}
  #allocation0 [shape = 'u32[]', space=smem, size = 0x4, offset = 0x4, fixed_abs, tag = 'smem constant byte address 0x4 - core index']
  #allocation1 [shape = 'u32[144,128]{1,0:T(1,128)}', space=vmem, size = 0x12000, scoped, tag = 'internal scratch']
  #allocation2 [shape = 's32[1]{0:T(128)S(6)}', space=smem, size = 0x200, scoped, tag = 'scoped memory for tpu_custom_call.1']
  %s0 = inlined_call_operand.<no memory space> [shape: s32[1], index: 0, kind: input, shape index: {}]
  %s1 = inlined_call_operand.hbm [shape: f32[16,128], index: 1, kind: input, shape index: {}, may-alias: {1,2}]
  %s2 = inlined_call_operand.hbm [shape: f32[16,128], index: 2, kind: output, shape index: {}, may-alias: {1,2}]
  %s3 = sld [smem:[#allocation0]]
  $region22: #{tpu_custom_call.1} parent=0
    _
  %s5 = ssub.s32 1, %s3
  %s6 = scalar_select 0, %s5, %s3
  %7 = sst [smem:[#allocation2]] %s0
  $region1: #{tpu_custom_call.1} parent=0
    #allocation3 [shape = 'u8[8192]{0}', space=vmem, size = 0x2000, scoped, tag = 'input window, operand 1, single buffered']
    #allocation4 [shape = 's32[1]{0}', space=sflag, size = 0x4, scoped, tag = 'scoped memory for tpu_custom_call.1']
    #allocation5 [shape = 's32[1]{0}', space=sflag, size = 0x4, scoped, tag = 'scoped memory for tpu_custom_call.1']
    #allocation6 [shape = 'u8[8192]{0}', space=vmem, size = 0x2000, scoped, tag = 'output window, operand 0, single buffered']
    %8 = vsyncpa [#allocation4], 0
    %9 = vsyncpa [#allocation5], 0
    // Predicated region
    $region2: #{tpu_custom_call.1} parent=1 // pred_check
      _
    $region3: #{tpu_custom_call.1} parent=1 // pred_check_branch
      %11 = sbr.rel (0) target = $region5
    $region4: #{tpu_custom_call.1} parent=1 // pred_region
      _
    $region5: #{tpu_custom_call.1} parent=1 // pred_fallthru
      _
    // Predicated region
    $region6: #{tpu_custom_call.1} parent=1 // pred_check
      _
    $region7: #{tpu_custom_call.1} parent=1 // pred_check_branch
      %13 = sbr.rel (0) target = $region9
    $region8: #{tpu_custom_call.1} parent=1 // pred_region
      %s15 = ssub.s32 256, 256
      %16 = vsyncadd [#allocation4], %s15
      %s17 = sshll.u32 [#allocation3], 4
      %s18 = int_to_ptr.vmem [resolvable:$true] %s17
      %23 = dma.hbm_to_vmem [thread:$0]  %s1, 256, %s18, [#allocation4], 128, 128, 8
    $region9: #{tpu_custom_call.1} parent=1 // pred_fallthru
      _
    // Predicated region
    $region10: #{tpu_custom_call.1} parent=1 // pred_check
      _
    $region11: #{tpu_custom_call.1} parent=1 // pred_check_branch
      %25 = sbr.rel (0) target = $region13
    $region12: #{tpu_custom_call.1} parent=1 // pred_region
      %26 = dma.done [#allocation4], 256
    $region13: #{tpu_custom_call.1} parent=1 // pred_fallthru
      _
    %s27 = sld [smem:[#allocation2]]
    %v28 = vlaneseq
    %v29 = vshrl.u32 %v28, 7
    %v30 = vlaneseq
    %v31 = vand.u32 %v30, 127
    %s32 = smul.u32 0, 1024
    %v33 = vmul.u32 %v29, 128
    %v34 = vstv %s32
    %v35 = vadd.s32 %v34, %v33
    %v36 = vadd.s32 %v35, %v31
    %v37 = vmul.u32 %v36, 2
    %s38 = smul.u32 %s27, 2654435769
    %v39 = vstv %s38
    %v40 = vadd.s32 %v37, %v39
    %v41 = vshra.s32 %v40, 16
    %v42 = vand.u32 %v41, 65535
    %v43 = vxor.u32 %v40, %v42
    %v44 = vmul.u32 %v43, 2146121005
    %v45 = vshra.s32 %v44, 15
    %v46 = vand.u32 %v45, 131071
    %v47 = vxor.u32 %v44, %v46
    %v48 = vmul.u32 %v47, 2221713035
    %v49 = vshra.s32 %v48, 16
    %v50 = vand.u32 %v49, 65535
    %v51 = vxor.u32 %v48, %v50
    %v52 = vadd.s32 %v40, 1
    %v53 = vshra.s32 %v52, 16
    %v54 = vand.u32 %v53, 65535
    %v55 = vxor.u32 %v52, %v54
    %v56 = vmul.u32 %v55, 2146121005
    %v57 = vshra.s32 %v56, 15
    %v58 = vand.u32 %v57, 131071
    %v59 = vxor.u32 %v56, %v58
    %v60 = vmul.u32 %v59, 2221713035
    %v61 = vshra.s32 %v60, 16
    %v62 = vand.u32 %v61, 65535
    %v63 = vxor.u32 %v60, %v62
    %v64 = vand.u32 %v51, 16777215
    %v65 = vcvt.s32.f32 %v64
    %v66 = vadd.f32 %v65, 0.5
    %v67 = vmul.f32 %v66, 5.9604645e-08
    %v68 = vand.u32 %v63, 16777215
    %v69 = vcvt.s32.f32 %v68
    %v70 = vadd.f32 %v69, 0.5
    %v71 = vmul.f32 %v70, 5.9604645e-08
    %v72 = vlog2.pop %v67
    %v73 = vmul.f32 %v72, 0.6931472
    %v74 = vmul.f32 %v73, -2.0
    %v75 = vrsqrt.pop %v74
    %v76 = vmul.f32 %v74, %v75
    %vm77 = vcmp.eq.f32.partialorder %v74, inf
    %v78 = vsel %vm77, %v74, %v76
    %vm79 = vcmp.eq.f32.partialorder %v74, 0.0
    %v80 = vand.u32 %v74, 2147483648
    %v81 = vsel %vm79, %v80, %v78
    %v82 = vmul.f32 %v71, 6.2831855
    %v83 = vand.u32 2147483647, %v82
    %vm84 = vcmp.le.f32.partialorder %v83, 0.7853982
    %vm85 = vcmp.lt.s32.totalorder %v82, 0
    %v86 = vand.u32 %v82, 2139095040
    %v87 = vshrl.u32 %v86, 23
    %v88 = vsub.s32 %v87, 127
    %v89 = vand.u32 2147483647, %v82
    %v90 = vand.u32 %v89, 8388607
    %v91 = vor.u32 %v90, 8388608
    %v92 = vsub.s32 0, %v91
    %v93 = vadd.s32 %v88, 1
    %vm94 = vcmp.gt.s32.totalorder %v93, 0
    %v95 = vsel %vm94, %v93, 0
    %v96 = vshrl.u32 %v95, 5
    %v97 = vand.u32 %v95, 31
    %v98 = vsub.s32 32, %v97
    %v99 = vshrl.u32 683565275, %v98
    %v100 = vshll.u32 683565275, %v97
    %v101 = vshrl.u32 2475754826, %v98
    %v102 = vor.u32 %v100, %v101
    %v103 = vshll.u32 2475754826, %v97
    %v104 = vshrl.u32 2131351028, %v98
    %v105 = vor.u32 %v103, %v104
    %v106 = vshll.u32 2131351028, %v97
    %v107 = vshrl.u32 2102212464, %v98
    %v108 = vor.u32 %v106, %v107
    %v109 = vshll.u32 2102212464, %v97
    %v110 = vshrl.u32 920167782, %v98
    %v111 = vor.u32 %v109, %v110
    %v112 = vshll.u32 920167782, %v97
    %v113 = vshrl.u32 1326507024, %v98
    %v114 = vor.u32 %v112, %v113
    %vm115 = vcmp.lt.s32.totalorder %v96, 1
    %vm116 = vcmp.lt.s32.totalorder %v96, 2
    %vm117 = vcmp.lt.s32.totalorder %v96, 3
    %vm118 = vcmp.lt.s32.totalorder %v96, 4
    %v119 = vsel %vm115, %v99, %v102
    %v120 = vsel %vm118, %v108, 2102212464
    %v121 = vsel %vm117, %v105, %v120
    %v122 = vsel %vm116, %v119, %v121
    %v123 = vsel %vm115, %v102, %v105
    %v124 = vsel %vm118, %v111, 920167782
    %v125 = vsel %vm117, %v108, %v124
    %v126 = vsel %vm116, %v123, %v125
    %v127 = vsel %vm115, %v105, %v108
    %v128 = vsel %vm118, %v114, 1326507024
    %v129 = vsel %vm117, %v111, %v128
    %v130 = vsel %vm116, %v127, %v129
    %v131 = vshll.u32 %v91, 8
    %v132 = vmul.u32.u64.compose %v131, %v130
    %v133 = vextract.low.u32 %v132
    %v134 = vextract.high.u32 %v132
    %v135 = vmul.u32.u64.compose %v131, %v126
    %v136 = vextract.low.u32 %v135
    %v137 = vextract.high.u32 %v135
    %v138 = vmul.u32 %v131, %v122
    %v139 = vadd.s32 %v134, %v136
    %vm140 = vc.u32 %v134, %v136
    %v141 = vadd.s32 %v137, 1
    %v142 = vsel %vm140, %v141, %v137
    %v143 = vadd.s32 %v138, %v142
    %v144 = vadd.s32 %v143, 536870912
    %v145 = vshrl.u32 %v144, 30
    %v146 = vshll.u32 %v145, 30
    %v147 = vsub.s32 %v143, %v146
    %vm148 = vcmp.lt.s32.totalorder %v147, 0
    %v149 = vsub.s32 0, %v147
    %v150 = vsel %vm148, %v149, %v147
    %v151 = vclz %v150
    %v152 = vsub.s32 %v151, 2
    %vm153 = vcmp.gt.s32.totalorder 0, %v152
    %v154 = vsel %vm153, 0, %v152
    %v155 = vsub.s32 32, %v154
    %v156 = vshll.u32 %v147, %v154
    %v157 = vshrl.u32 %v139, %v155
    %v158 = vor.u32 %v156, %v157
    %v159 = vsub.s32 4294967266, %v154
    %v160 = vadd.s32 %v159, 127
    %v161 = vshll.u32 %v160, 23
    %v162 = vor.u32 4788187, %v161
    %v163 = vand.u32 2147483647, %v162
    %v165 = vcvt.s32.f32 %v158
    %v166 = vmul.f32 %v165, %v163
    %v167 = vxor.u32 %v166, 2147483648
    %v168 = vsel %vm85, %v167, %v166
    %v169 = vsub.s32 4, %v145
    %v170 = vsel %vm85, %v169, %v145
    %v171 = vsel %vm84, %v82, %v168
    %v172 = vsel %vm84, 0, %v170
    %v173 = vcosq.f32.pop %v171
    %v174 = vsinq.f32.pop %v171
    %vm175 = vweird.f32 %v82
    %v176 = vand.u32 %v172, 3
    %vm177 = vcmp.lt.s32.totalorder %v176, 2
    %vm178 = vcmp.eq.s32.totalorder %v176, 0
    %v179 = vxor.u32 %v174, 2147483648
    %v180 = vsel %vm178, %v173, %v179
    %vm181 = vcmp.eq.s32.totalorder %v176, 2
    %v182 = vxor.u32 %v173, 2147483648
    %v183 = vsel %vm181, %v182, %v174
    %v184 = vsel %vm177, %v180, %v183
    %v185 = vsel %vm175, nan, %v184
    %v186 = vmul.f32 %v81, %v185
    %v187 = vand.u32 2147483647, %v82
    %vm188 = vcmp.le.f32.partialorder %v187, 0.7853982
    %vm189 = vcmp.lt.s32.totalorder %v82, 0
    %v190 = vand.u32 %v82, 2139095040
    %v191 = vshrl.u32 %v190, 23
    %v192 = vsub.s32 %v191, 127
    %v193 = vand.u32 2147483647, %v82
    %v194 = vand.u32 %v193, 8388607
    %v195 = vor.u32 %v194, 8388608
    %v196 = vsub.s32 0, %v195
    %v197 = vadd.s32 %v192, 1
    %vm198 = vcmp.gt.s32.totalorder %v197, 0
    %v199 = vsel %vm198, %v197, 0
    %v200 = vshrl.u32 %v199, 5
    %v201 = vand.u32 %v199, 31
    %v202 = vsub.s32 32, %v201
    %v203 = vshrl.u32 683565275, %v202
    %v204 = vshll.u32 683565275, %v201
    %v205 = vshrl.u32 2475754826, %v202
    %v206 = vor.u32 %v204, %v205
    %v207 = vshll.u32 2475754826, %v201
    %v208 = vshrl.u32 2131351028, %v202
    %v209 = vor.u32 %v207, %v208
    %v210 = vshll.u32 2131351028, %v201
    %v211 = vshrl.u32 2102212464, %v202
    %v212 = vor.u32 %v210, %v211
    %v213 = vshll.u32 2102212464, %v201
    %v214 = vshrl.u32 920167782, %v202
    %v215 = vor.u32 %v213, %v214
    %v216 = vshll.u32 920167782, %v201
    %v217 = vshrl.u32 1326507024, %v202
    %v218 = vor.u32 %v216, %v217
    %vm219 = vcmp.lt.s32.totalorder %v200, 1
    %vm220 = vcmp.lt.s32.totalorder %v200, 2
    %vm221 = vcmp.lt.s32.totalorder %v200, 3
    %vm222 = vcmp.lt.s32.totalorder %v200, 4
    %v223 = vsel %vm219, %v203, %v206
    %v224 = vsel %vm222, %v212, 2102212464
    %v225 = vsel %vm221, %v209, %v224
    %v226 = vsel %vm220, %v223, %v225
    %v227 = vsel %vm219, %v206, %v209
    %v228 = vsel %vm222, %v215, 920167782
    %v229 = vsel %vm221, %v212, %v228
    %v230 = vsel %vm220, %v227, %v229
    %v231 = vsel %vm219, %v209, %v212
    %v232 = vsel %vm222, %v218, 1326507024
    %v233 = vsel %vm221, %v215, %v232
    %v234 = vsel %vm220, %v231, %v233
    %v235 = vshll.u32 %v195, 8
    %v236 = vmul.u32.u64.compose %v235, %v234
    %v237 = vextract.low.u32 %v236
    %v238 = vextract.high.u32 %v236
    %v239 = vmul.u32.u64.compose %v235, %v230
    %v240 = vextract.low.u32 %v239
    %v241 = vextract.high.u32 %v239
    %v242 = vmul.u32 %v235, %v226
    %v243 = vadd.s32 %v238, %v240
    %vm244 = vc.u32 %v238, %v240
    %v245 = vadd.s32 %v241, 1
    %v246 = vsel %vm244, %v245, %v241
    %v247 = vadd.s32 %v242, %v246
    %v248 = vadd.s32 %v247, 536870912
    %v249 = vshrl.u32 %v248, 30
    %v250 = vshll.u32 %v249, 30
    %v251 = vsub.s32 %v247, %v250
    %vm252 = vcmp.lt.s32.totalorder %v251, 0
    %v253 = vsub.s32 0, %v251
    %v254 = vsel %vm252, %v253, %v251
    %v255 = vclz %v254
    %v256 = vsub.s32 %v255, 2
    %vm257 = vcmp.gt.s32.totalorder 0, %v256
    %v258 = vsel %vm257, 0, %v256
    %v259 = vsub.s32 32, %v258
    %v260 = vshll.u32 %v251, %v258
    %v261 = vshrl.u32 %v243, %v259
    %v262 = vor.u32 %v260, %v261
    %v263 = vsub.s32 4294967266, %v258
    %v264 = vadd.s32 %v263, 127
    %v265 = vshll.u32 %v264, 23
    %v266 = vor.u32 4788187, %v265
    %v267 = vand.u32 2147483647, %v266
    %v269 = vcvt.s32.f32 %v262
    %v270 = vmul.f32 %v269, %v267
    %v271 = vxor.u32 %v270, 2147483648
    %v272 = vsel %vm189, %v271, %v270
    %v273 = vsub.s32 4, %v249
    %v274 = vsel %vm189, %v273, %v249
    %v275 = vsel %vm188, %v82, %v272
    %v276 = vsel %vm188, 0, %v274
    %v277 = vcosq.f32.pop %v275
    %v278 = vsinq.f32.pop %v275
    %vm279 = vweird.f32 %v82
    %v280 = vadd.s32 %v276, 3
    %v281 = vand.u32 %v280, 3
    %vm282 = vcmp.lt.s32.totalorder %v281, 2
    %vm283 = vcmp.eq.s32.totalorder %v281, 0
    %v284 = vxor.u32 %v278, 2147483648
    %v285 = vsel %vm283, %v277, %v284
    %vm286 = vcmp.eq.s32.totalorder %v281, 2
    %v287 = vxor.u32 %v277, 2147483648
    %v288 = vsel %vm286, %v287, %v278
    %v289 = vsel %vm282, %v285, %v288
    %v290 = vsel %vm279, nan, %v289
    %v291 = vmul.f32 %v81, %v290
    %v292 = vld [vmem:[#allocation3] sm:$0xff]
    %v293 = vld [vmem:[#allocation3 + $0x8] sm:$0xff]
    %v294 = vmul.f32 %v292, 0.1
    %v295 = vmul.f32 %v293, 0.1
    %v296 = vmul.f32 %v186, %v294
    %v297 = vmul.f32 %v291, %v295
    %v298 = vadd.f32 %v292, %v296
    %v299 = vadd.f32 %v293, %v297
    %300 = vst [vmem:[#allocation6] sm:$0xff] %v298
    %301 = vst [vmem:[#allocation6 + $0x8] sm:$0xff] %v299
    // Predicated region
    $region14: #{tpu_custom_call.1} parent=1 // pred_check
      _
    $region15: #{tpu_custom_call.1} parent=1 // pred_check_branch
      %303 = sbr.rel (0) target = $region17
    $region16: #{tpu_custom_call.1} parent=1 // pred_region
      %s305 = ssub.s32 256, 256
      %306 = vsyncadd [#allocation5], %s305
      %s307 = sshll.u32 [#allocation6], 4
      %s308 = int_to_ptr.vmem [resolvable:$true] %s307
      %313 = dma.vmem_to_hbm [thread:$0]  %s308, 256, %s2, [#allocation5], 128, 128, 8
    $region17: #{tpu_custom_call.1} parent=1 // pred_fallthru
      _
    // Predicated region
    $region18: #{tpu_custom_call.1} parent=1 // pred_check
      _
    $region19: #{tpu_custom_call.1} parent=1 // pred_check_branch
      %315 = sbr.rel (0) target = $region21
    $region20: #{tpu_custom_call.1} parent=1 // pred_region
      %316 = dma.done [#allocation5], 256
    $region21: #{tpu_custom_call.1} parent=1 // pred_fallthru
      _
    %317 = vsyncpa [#allocation4], 1
    %318 = vsyncpa [#allocation5], 1

</llo_original>
